<compile_context>
chip_gen: v7x
topology: tpu7x:2x2x1
jax: 0.10.0
libtpu: 0.0.40
codegen_flags: <defaults>
</compile_context>

<pallas_src>
from functools import partial

import jax
import jax.numpy as jnp
import numpy as np
from jax.experimental import pallas as pl
from jax.experimental.pallas import tpu as pltpu


def se_kernel(x_ref, w1_ref, b1_ref, w2_ref, b2_ref, o_ref, *,
              channels_last: bool, use_mxu: bool):
    """One grid step processes a whole (Nb, C, HW) or (Nb, HW, C) slab of images."""
    x = x_ref[...]                                     # input dtype, never widened as a whole
    hw = x.shape[1] if channels_last else x.shape[2]
    inv_hw = jnp.float32(1.0 / hw)

    # ---- Phase 1: batched global average pool (f32 accumulation only here) ----
    reduce_axis = 1 if channels_last else 2
    pooled = jnp.sum(x, axis=reduce_axis, dtype=jnp.float32) * inv_hw        # (Nb, C) f32

    # Tiny parameters (f32), loaded once per grid step.
    w1 = w1_ref[...]                                   # (Sq, C)
    b1 = b1_ref[...]                                   # (1, Sq)
    w2 = w2_ref[...]                                   # (C, Sq)
    b2 = b2_ref[...]                                   # (1, C)

    # ---- Phase 2: batched FC1 -> SiLU -> FC2 -> sigmoid for all Nb images at once ----
    if use_mxu:
        # Large Nb*Sq*C: one small MXU dot per block avoids a big broadcast temporary.
        s = jax.lax.dot_general(pooled, w1, (((1,), (1,)), ((), ())),
                                preferred_element_type=jnp.float32) + b1      # (Nb, Sq)
        h = s * jax.nn.sigmoid(s)
        z = jax.lax.dot_general(h, w2, (((1,), (1,)), ((), ())),
                                preferred_element_type=jnp.float32) + b2      # (Nb, C)
    else:
        # Batched VPU/XLU broadcast-reduce (off MXU); temporaries are tiny here.
        s = jnp.sum(w1[None, :, :] * pooled[:, None, :], axis=-1) + b1        # (Nb, Sq)
        h = s * jax.nn.sigmoid(s)
        z = jnp.sum(w2[None, :, :] * h[:, None, :], axis=-1) + b2             # (Nb, C)

    # Single tiny downcast of the per-channel gate; gate multiply runs in the input
    # dtype so the whole slab is never widened (bf16 double-rounds vs PyTorch; OK).
    scale = jax.nn.sigmoid(z).astype(o_ref.dtype)                             # (Nb, C)

    # ---- Phase 3: batched gate multiply + lane-dense store ----
    if channels_last:
        o_ref[...] = x * scale[:, None, :]             # (Nb, HW, C) * (Nb, 1, C)
    else:
        o_ref[...] = x * scale[:, :, None]             # (Nb, C, HW) * (Nb, C, 1)


def _vmem_capacity_bytes(default=64 * 1024 * 1024):
    """Physical VMEM per TensorCore; conservative (v7x) fallback if query fails."""
    try:
        info = pltpu.get_tpu_info()
        cap = getattr(info, "vmem_capacity_bytes", None)
        if cap:
            return int(cap)
    except Exception:
        pass
    return default


def squeeze_excitation(x, w1, b1, w2, b2):
    """x: (N, C, H, W); w1: (Sq, C); b1: (Sq,); w2: (C, Sq); b2: (C,)."""
    N, C, H, W = x.shape
    HW = H * W
    Sq = w1.shape[0]
    itemsize = jnp.dtype(x.dtype).itemsize

    # ---- choose a lane-dense layout (unmasked vst) without padding HBM bytes ----
    if HW % 128 == 0:
        channels_last = False
        x_flat = x.reshape(N, C, HW)                        # free reshape, HW on lanes
        blk_tail = (C, HW)
    elif C % 128 == 0:
        channels_last = True
        # Layout plumbing only: in a fused model the producer should emit channels-last
        # directly; here we transpose once on the wrapper side so kernel stores are
        # lane-dense (C on lanes).
        x_flat = jnp.transpose(x.reshape(N, C, HW), (0, 2, 1))   # (N, HW, C)
        blk_tail = (HW, C)
    else:
        channels_last = False
        x_flat = x.reshape(N, C, HW)
        blk_tail = (C, HW)
        # TODO(synk): neither HW nor C is a multiple of 128 -> masked partial stores
        # (correct but slower); padding a lane axis would trade extra HBM bytes on a
        # purely memory-bound kernel, so it is intentionally not done here.

    # Tiny parameters as f32 with row-vector biases (batched FC math in the kernel).
    w1f = w1.astype(jnp.float32)                            # (Sq, C)
    w2f = w2.astype(jnp.float32)                            # (C, Sq)
    b1r = b1.astype(jnp.float32).reshape(1, Sq)             # (1, Sq)
    b2r = b2.astype(jnp.float32).reshape(1, C)              # (1, C)

    # ---- per-generation block sizing from physical VMEM (v5e/v6e 128 MiB, v7x 64 MiB) ----
    phys_vmem = _vmem_capacity_bytes()
    per_image = C * HW * itemsize
    # f32 pool-accumulation temp of one block when the input is sub-32-bit (bf16 etc.).
    widen_per_image = C * HW * 4 if itemsize < 4 else 0
    pipeline_per_image = 4 * per_image + widen_per_image    # 2x in + 2x out buffers + widen temp
    usable = int(phys_vmem * 0.70)                          # headroom for params/compiler temps
    nb = max(1, usable // max(pipeline_per_image, 1))
    nb = min(nb, N)
    if N >= 2:
        nb = min(nb, pl.cdiv(N, 2))     # guarantee >= 2 grid steps -> both v7x cores get work
    grid = (pl.cdiv(N, nb),)            # boundary block handled by Pallas; no nb | N requirement

    param_bytes = (w1f.size + w2f.size + b1r.size + b2r.size) * 4
    vmem_limit = nb * pipeline_per_image + 4 * param_bytes + (4 << 20)
    vmem_limit = int(min(max(vmem_limit, 16 << 20), int(phys_vmem * 0.85)))
    # TODO(synk): if a single image's (C, HW) slab is too big even for nb=1 on v7x,
    # split into a pooled/FC pass plus a tiled, lane-dense gated-multiply pass.

    # Keep the tiny FCs off the MXU unless the batched broadcast temp would be large.
    use_mxu = (nb * Sq * C * 4) > (2 << 20)

    kernel = partial(se_kernel, channels_last=channels_last, use_mxu=use_mxu)

    out = pl.pallas_call(
        kernel,
        out_shape=jax.ShapeDtypeStruct(x_flat.shape, x.dtype),
        grid_spec=pltpu.PrefetchScalarGridSpec(
            num_scalar_prefetch=0,
            grid=grid,
            in_specs=[
                pl.BlockSpec((nb,) + blk_tail, lambda i: (i, 0, 0)),   # x slab (Nb images)
                pl.BlockSpec((Sq, C), lambda i: (0, 0)),               # w1 (full)
                pl.BlockSpec((1, Sq), lambda i: (0, 0)),               # b1 row
                pl.BlockSpec((C, Sq), lambda i: (0, 0)),               # w2 (full)
                pl.BlockSpec((1, C), lambda i: (0, 0)),                # b2 row
            ],
            out_specs=pl.BlockSpec((nb,) + blk_tail, lambda i: (i, 0, 0)),
        ),
        compiler_params=pltpu.CompilerParams(
            dimension_semantics=("parallel",),
            vmem_limit_bytes=vmem_limit,
        ),
    )(x_flat, w1f, b1r, w2f, b2r)

    if channels_last:
        out = jnp.transpose(out, (0, 2, 1))
    return out.reshape(N, C, H, W)


def reference(x, w1, b1, w2, b2):
    pooled = jnp.mean(x, axis=(2, 3))                          # (N, C)
    s = pooled @ w1.T + b1                                     # (N, Sq)
    h = s * jax.nn.sigmoid(s)
    z = h @ w2.T + b2                                          # (N, C)
    scale = jax.nn.sigmoid(z)
    return scale[:, :, None, None] * x


if __name__ == "__main__":
    # Module config: input_c=8, expand_c=32 (expand ratio 4), squeeze_factor=4 -> squeeze_c=2
    input_c, expand_c, squeeze_factor = 8, 32, 4
    squeeze_c = input_c // squeeze_factor

    N, C, H, W = 2, expand_c, 16, 16

    key = jax.random.PRNGKey(0)
    kx, k1, k2, k3, k4 = jax.random.split(key, 5)

    x = jax.random.normal(kx, (N, C, H, W), dtype=jnp.float32)

    # Deterministic parameter init, shapes match nn.Conv2d(expand_c, squeeze_c, 1) etc.
    w1 = jax.random.normal(k1, (squeeze_c, expand_c), dtype=jnp.float32) / np.sqrt(expand_c)
    b1 = jax.random.normal(k2, (squeeze_c,), dtype=jnp.float32) * 0.1
    w2 = jax.random.normal(k3, (expand_c, squeeze_c), dtype=jnp.float32) / np.sqrt(squeeze_c)
    b2 = jax.random.normal(k4, (expand_c,), dtype=jnp.float32) * 0.1

    out = squeeze_excitation(x, w1, b1, w2, b2)
    out = jax.block_until_ready(out)

    ref = reference(x, w1, b1, w2, b2)
    np.testing.assert_allclose(np.asarray(out), np.asarray(ref), rtol=1e-5, atol=1e-5)

    print("KERNEL_OK")
</pallas_src>

<mosaic_0001>
module attributes {stable_mosaic.version = 11 : i64} {
  func.func @se_kernel(%arg0: i32, %arg1: memref<1x32x256xf32, #tpu.memory_space<vmem>>, %arg2: memref<2x32xf32, #tpu.memory_space<vmem>>, %arg3: memref<1x2xf32, #tpu.memory_space<vmem>>, %arg4: memref<32x2xf32, #tpu.memory_space<vmem>>, %arg5: memref<1x32xf32, #tpu.memory_space<vmem>>, %arg6: memref<1x32x256xf32, #tpu.memory_space<vmem>>) attributes {dimension_semantics = [#tpu.dimension_semantics<parallel>], iteration_bounds = array<i64: 2>, scalar_prefetch = 0 : i64, scratch_operands = 0 : i64, tpu.core_type = #tpu.core_type<tc>, window_params = [{transform_indices = @transform_0, window_bounds = array<i64: 1, 32, 256>}, {pipeline_mode = #tpu.pipeline_mode<synchronous>, transform_indices = @transform_1, window_bounds = array<i64: 2, 32>}, {pipeline_mode = #tpu.pipeline_mode<synchronous>, transform_indices = @transform_2, window_bounds = array<i64: 1, 2>}, {pipeline_mode = #tpu.pipeline_mode<synchronous>, transform_indices = @transform_3, window_bounds = array<i64: 32, 2>}, {pipeline_mode = #tpu.pipeline_mode<synchronous>, transform_indices = @transform_4, window_bounds = array<i64: 1, 32>}, {transform_indices = @transform_5, window_bounds = array<i64: 1, 32, 256>}]} {
    %c0 = arith.constant 0 : index
    %c0_0 = arith.constant 0 : index
    %c0_1 = arith.constant 0 : index
    %0 = vector.load %arg1[%c0, %c0_0, %c0_1] : memref<1x32x256xf32, #tpu.memory_space<vmem>>, vector<1x32x256xf32>
    %cst = arith.constant dense<0.000000e+00> : vector<1x32xf32>
    %1 = vector.multi_reduction <add>, %0, %cst [2] : vector<1x32x256xf32> to vector<1x32xf32>
    %cst_2 = arith.constant 3.906250e-03 : f32
    %2 = vector.broadcast %cst_2 : f32 to vector<1x32xf32>
    %3 = arith.mulf %1, %2 : vector<1x32xf32>
    %c0_3 = arith.constant 0 : index
    %c0_4 = arith.constant 0 : index
    %4 = vector.load %arg2[%c0_3, %c0_4] : memref<2x32xf32, #tpu.memory_space<vmem>>, vector<2x32xf32>
    %c0_5 = arith.constant 0 : index
    %c0_6 = arith.constant 0 : index
    %5 = vector.load %arg3[%c0_5, %c0_6] : memref<1x2xf32, #tpu.memory_space<vmem>>, vector<1x2xf32>
    %c0_7 = arith.constant 0 : index
    %c0_8 = arith.constant 0 : index
    %6 = vector.load %arg4[%c0_7, %c0_8] : memref<32x2xf32, #tpu.memory_space<vmem>>, vector<32x2xf32>
    %c0_9 = arith.constant 0 : index
    %c0_10 = arith.constant 0 : index
    %7 = vector.load %arg5[%c0_9, %c0_10] : memref<1x32xf32, #tpu.memory_space<vmem>>, vector<1x32xf32>
    %8 = vector.shape_cast %4 : vector<2x32xf32> to vector<1x2x32xf32>
    %9 = vector.shape_cast %3 : vector<1x32xf32> to vector<1x1x32xf32>
    %10 = vector.broadcast %9 : vector<1x1x32xf32> to vector<1x2x32xf32>
    %11 = arith.mulf %8, %10 : vector<1x2x32xf32>
    %cst_11 = arith.constant dense<0.000000e+00> : vector<1x2xf32>
    %12 = vector.multi_reduction <add>, %11, %cst_11 [2] : vector<1x2x32xf32> to vector<1x2xf32>
    %13 = arith.addf %12, %5 : vector<1x2xf32>
    %14 = arith.negf %13 : vector<1x2xf32>
    %15 = math.exp %14 : vector<1x2xf32>
    %cst_12 = arith.constant 1.000000e+00 : f32
    %16 = vector.broadcast %cst_12 : f32 to vector<1x2xf32>
    %17 = arith.addf %16, %15 : vector<1x2xf32>
    %18 = arith.divf %16, %17 : vector<1x2xf32>
    %19 = arith.mulf %13, %18 : vector<1x2xf32>
    %20 = vector.shape_cast %6 : vector<32x2xf32> to vector<1x32x2xf32>
    %21 = vector.shape_cast %19 : vector<1x2xf32> to vector<1x1x2xf32>
    %22 = vector.broadcast %21 : vector<1x1x2xf32> to vector<1x32x2xf32>
    %23 = arith.mulf %20, %22 : vector<1x32x2xf32>
    %cst_13 = arith.constant dense<0.000000e+00> : vector<1x32xf32>
    %24 = vector.multi_reduction <add>, %23, %cst_13 [2] : vector<1x32x2xf32> to vector<1x32xf32>
    %25 = arith.addf %24, %7 : vector<1x32xf32>
    %26 = arith.negf %25 : vector<1x32xf32>
    %27 = math.exp %26 : vector<1x32xf32>
    %cst_14 = arith.constant 1.000000e+00 : f32
    %28 = vector.broadcast %cst_14 : f32 to vector<1x32xf32>
    %29 = arith.addf %28, %27 : vector<1x32xf32>
    %30 = arith.divf %28, %29 : vector<1x32xf32>
    %31 = vector.shape_cast %30 : vector<1x32xf32> to vector<1x32x1xf32>
    %32 = vector.broadcast %31 : vector<1x32x1xf32> to vector<1x32x256xf32>
    %33 = arith.mulf %0, %32 : vector<1x32x256xf32>
    %c0_15 = arith.constant 0 : index
    %c0_16 = arith.constant 0 : index
    %c0_17 = arith.constant 0 : index
    %34 = vector.load %arg6[%c0_15, %c0_16, %c0_17] : memref<1x32x256xf32, #tpu.memory_space<vmem>>, vector<1x32x256xf32>
    tpu.vector_store %arg6[%c0_15, %c0_16, %c0_17], %33 {strides = array<i32>} : memref<1x32x256xf32, #tpu.memory_space<vmem>>, vector<1x32x256xf32>,
    return
  }
  func.func @transform_0(%arg0: i32) -> (i32, i32, i32) {
    %c0_i32 = arith.constant 0 : i32
    %c0_i32_0 = arith.constant 0 : i32
    %c0_i32_1 = arith.constant 0 : i32
    return %arg0, %c0_i32, %c0_i32_0 : i32, i32, i32
  }
  func.func @transform_1(%arg0: i32) -> (i32, i32) {
    %c0_i32 = arith.constant 0 : i32
    %c0_i32_0 = arith.constant 0 : i32
    %c0_i32_1 = arith.constant 0 : i32
    return %c0_i32, %c0_i32_0 : i32, i32
  }
  func.func @transform_2(%arg0: i32) -> (i32, i32) {
    %c0_i32 = arith.constant 0 : i32
    %c0_i32_0 = arith.constant 0 : i32
    %c0_i32_1 = arith.constant 0 : i32
    return %c0_i32, %c0_i32_0 : i32, i32
  }
  func.func @transform_3(%arg0: i32) -> (i32, i32) {
    %c0_i32 = arith.constant 0 : i32
    %c0_i32_0 = arith.constant 0 : i32
    %c0_i32_1 = arith.constant 0 : i32
    return %c0_i32, %c0_i32_0 : i32, i32
  }
  func.func @transform_4(%arg0: i32) -> (i32, i32) {
    %c0_i32 = arith.constant 0 : i32
    %c0_i32_0 = arith.constant 0 : i32
    %c0_i32_1 = arith.constant 0 : i32
    return %c0_i32, %c0_i32_0 : i32, i32
  }
  func.func @transform_5(%arg0: i32) -> (i32, i32, i32) {
    %c0_i32 = arith.constant 0 : i32
    %c0_i32_0 = arith.constant 0 : i32
    %c0_i32_1 = arith.constant 0 : i32
    return %arg0, %c0_i32, %c0_i32_0 : i32, i32, i32
  }
}

</mosaic_0001>

<llo_original>
// kernel: tpu_custom_call.1
$region0: #{tpu_custom_call.1}
  #allocation0 [shape = 'u32[]', space=smem, size = 0x4, offset = 0x4, fixed_abs, tag = 'smem constant byte address 0x4 - core index']
  #allocation1 [shape = 'u32[144,128]{1,0:T(1,128)}', space=vmem, size = 0x12000, scoped, tag = 'internal scratch']
  %s0 = inlined_call_operand.hbm [shape: f32[2,32,256], index: 0, kind: input, shape index: {}]
  %s1 = inlined_call_operand.vmem [shape: f32[2,32], index: 1, kind: input, shape index: {}]
  %s2 = inlined_call_operand.vmem [shape: f32[1,2], index: 2, kind: input, shape index: {}]
  %s3 = inlined_call_operand.vmem [shape: f32[32,2], index: 3, kind: input, shape index: {}]
  %s4 = inlined_call_operand.vmem [shape: f32[1,32], index: 4, kind: input, shape index: {}]
  %s5 = inlined_call_operand.hbm [shape: f32[2,32,256], index: 5, kind: output, shape index: {}]
  %s6 = sld [smem:[#allocation0]]
  $region57: #{tpu_custom_call.1} parent=0
    _
  %s8 = ssub.s32 1, %s6
  %s9 = scalar_select 0, %s8, %s6
  $region1: #{tpu_custom_call.1} parent=0
    #allocation2 [shape = 'u8[65536]{0}', space=vmem, size = 0x10000, scoped, tag = 'input window, operand 0']
    #allocation3 [shape = 's32[2]{0}', space=sflag, size = 0x8, scoped, tag = 'scoped memory for tpu_custom_call.1']
    #allocation4 [shape = 's32[2]{0}', space=sflag, size = 0x8, scoped, tag = 'scoped memory for tpu_custom_call.1']
    #allocation5 [shape = 'u8[65536]{0}', space=vmem, size = 0x10000, scoped, tag = 'output window, operand 0']
    %10 = vsyncpa [#allocation3], 0
    %s11 = scalar_lea.sflag [#allocation3], 1
    %12 = vsyncpa %s11, 0
    %13 = vsyncpa [#allocation4], 0
    %s14 = scalar_lea.sflag [#allocation4], 1
    %15 = vsyncpa %s14, 0
    loop: start=0, step=1, limit=4
    $region2: #{tpu_custom_call.1} parent=1 // loop_pre_header
      _
    $region3: #{tpu_custom_call.1} parent=1 // loop_header
      %s17 = sphi 0, %s21
      %p18 = scmp.ge.s32.totalorder %s17, 4
      %s27 = sphi 0, %s29
      %s30 = sphi 0, %s27
      %s31 = sphi 0, %s30
      %s47 = sphi 0, %s31
      %s51 = sphi 0, %s51
      %s53 = sphi 0, %s51
      %s54 = sphi 0, %s53
      %s68 = sphi 0, %s54
      %s72 = sphi 0, %s72
      %s74 = sphi 0, %s72
      %s75 = sphi 0, %s74
      %s89 = sphi 0, %s75
      %s93 = sphi 0, %s93
      %s95 = sphi 0, %s93
      %s96 = sphi 0, %s95
      %s110 = sphi 0, %s96
      %s114 = sphi 0, %s114
      %s116 = sphi 0, %s114
      %s117 = sphi 0, %s116
      %s131 = sphi 0, %s117
      %s137 = sphi 0, %s139
      %s140 = sphi 0, %s137
      %s141 = sphi 0, %s140
      %s157 = sphi 0, %s141
    $region4: #{tpu_custom_call.1} parent=1 // loop_header_branch
      %20 = sbr.rel (%p18) target = $region8
    $region5: #{tpu_custom_call.1} parent=1 // loop_body
      %s22 = ssub.s32 %s17, 1
      %s23 = ssub.s32 %s17, 2
      %s24 = sadd.s32 %s17, 1
      %s25 = ssub.s32 %s17, %s24
      %p26 = scmp.eq.s32.totalorder %s25, 0
      %s28 = sadd.s32 %s27, 1
      %s29 = scalar_select %p26, %s27, %s28
      %p32 = pneg %p26
      %p33 = scmp.eq.s32.totalorder %s17, 1
      %p34 = por %p32, %p33
      %p35 = scmp.ne.s32.totalorder %s27, %s30
      %p36 = scmp.eq.s32.totalorder %s17, 0
      %p37 = por %p35, %p36
      %p38 = scmp.ne.s32.totalorder %s27, %s30
      %p39 = scmp.eq.s32.totalorder %s22, 1
      %p40 = por %p38, %p39
      %p41 = scmp.ne.s32.totalorder %s30, %s31
      %p42 = scmp.eq.s32.totalorder %s22, 0
      %p43 = por %p41, %p42
      %p44 = scmp.ne.s32.totalorder %s30, %s31
      %p45 = scmp.eq.s32.totalorder %s23, 1
      %p46 = por %p44, %p45
      %p48 = scmp.ne.s32.totalorder %s31, %s47
      %p49 = scmp.eq.s32.totalorder %s23, 0
      %p50 = por %p48, %p49
      %s52 = sadd.s32 %s51, 1
      %p55 = scmp.eq.s32.totalorder %s17, 1
      %p56 = scmp.ne.s32.totalorder %s51, %s53
      %p57 = scmp.eq.s32.totalorder %s17, 0
      %p58 = por %p56, %p57
      %p59 = scmp.ne.s32.totalorder %s51, %s53
      %p60 = scmp.eq.s32.totalorder %s22, 1
      %p61 = por %p59, %p60
      %p62 = scmp.ne.s32.totalorder %s53, %s54
      %p63 = scmp.eq.s32.totalorder %s22, 0
      %p64 = por %p62, %p63
      %p65 = scmp.ne.s32.totalorder %s53, %s54
      %p66 = scmp.eq.s32.totalorder %s23, 1
      %p67 = por %p65, %p66
      %p69 = scmp.ne.s32.totalorder %s54, %s68
      %p70 = scmp.eq.s32.totalorder %s23, 0
      %p71 = por %p69, %p70
      %s73 = sadd.s32 %s72, 1
      %p76 = scmp.eq.s32.totalorder %s17, 1
      %p77 = scmp.ne.s32.totalorder %s72, %s74
      %p78 = scmp.eq.s32.totalorder %s17, 0
      %p79 = por %p77, %p78
      %p80 = scmp.ne.s32.totalorder %s72, %s74
      %p81 = scmp.eq.s32.totalorder %s22, 1
      %p82 = por %p80, %p81
      %p83 = scmp.ne.s32.totalorder %s74, %s75
      %p84 = scmp.eq.s32.totalorder %s22, 0
      %p85 = por %p83, %p84
      %p86 = scmp.ne.s32.totalorder %s74, %s75
      %p87 = scmp.eq.s32.totalorder %s23, 1
      %p88 = por %p86, %p87
      %p90 = scmp.ne.s32.totalorder %s75, %s89
      %p91 = scmp.eq.s32.totalorder %s23, 0
      %p92 = por %p90, %p91
      %s94 = sadd.s32 %s93, 1
      %p97 = scmp.eq.s32.totalorder %s17, 1
      %p98 = scmp.ne.s32.totalorder %s93, %s95
      %p99 = scmp.eq.s32.totalorder %s17, 0
      %p100 = por %p98, %p99
      %p101 = scmp.ne.s32.totalorder %s93, %s95
      %p102 = scmp.eq.s32.totalorder %s22, 1
      %p103 = por %p101, %p102
      %p104 = scmp.ne.s32.totalorder %s95, %s96
      %p105 = scmp.eq.s32.totalorder %s22, 0
      %p106 = por %p104, %p105
      %p107 = scmp.ne.s32.totalorder %s95, %s96
      %p108 = scmp.eq.s32.totalorder %s23, 1
      %p109 = por %p107, %p108
      %p111 = scmp.ne.s32.totalorder %s96, %s110
      %p112 = scmp.eq.s32.totalorder %s23, 0
      %p113 = por %p111, %p112
      %s115 = sadd.s32 %s114, 1
      %p118 = scmp.eq.s32.totalorder %s17, 1
      %p119 = scmp.ne.s32.totalorder %s114, %s116
      %p120 = scmp.eq.s32.totalorder %s17, 0
      %p121 = por %p119, %p120
      %p122 = scmp.ne.s32.totalorder %s114, %s116
      %p123 = scmp.eq.s32.totalorder %s22, 1
      %p124 = por %p122, %p123
      %p125 = scmp.ne.s32.totalorder %s116, %s117
      %p126 = scmp.eq.s32.totalorder %s22, 0
      %p127 = por %p125, %p126
      %p128 = scmp.ne.s32.totalorder %s116, %s117
      %p129 = scmp.eq.s32.totalorder %s23, 1
      %p130 = por %p128, %p129
      %p132 = scmp.ne.s32.totalorder %s117, %s131
      %p133 = scmp.eq.s32.totalorder %s23, 0
      %p134 = por %p132, %p133
      %s135 = ssub.s32 %s17, %s24
      %p136 = scmp.eq.s32.totalorder %s135, 0
      %s138 = sadd.s32 %s137, 1
      %s139 = scalar_select %p136, %s137, %s138
      %p142 = pneg %p136
      %p143 = scmp.eq.s32.totalorder %s17, 1
      %p144 = por %p142, %p143
      %p145 = scmp.ne.s32.totalorder %s137, %s140
      %p146 = scmp.eq.s32.totalorder %s17, 0
      %p147 = por %p145, %p146
      %p148 = scmp.ne.s32.totalorder %s137, %s140
      %p149 = scmp.eq.s32.totalorder %s22, 1
      %p150 = por %p148, %p149
      %p151 = scmp.ne.s32.totalorder %s140, %s141
      %p152 = scmp.eq.s32.totalorder %s22, 0
      %p153 = por %p151, %p152
      %p154 = scmp.ne.s32.totalorder %s140, %s141
      %p155 = scmp.eq.s32.totalorder %s23, 1
      %p156 = por %p154, %p155
      %p158 = scmp.ne.s32.totalorder %s141, %s157
      %p159 = scmp.eq.s32.totalorder %s23, 0
      %p160 = por %p158, %p159
      %p161 = scmp.le.s32.totalorder 1, %s17
      %p162 = scmp.lt.s32.totalorder %s17, 3
      %p163 = pnand %p161, %p162
      %p164 = pneg %p163
      // Predicated region
      $region9: #{tpu_custom_call.1} parent=5 // pred_check
        _
      $region10: #{tpu_custom_call.1} parent=5 // pred_check_branch
        %166 = sbr.rel (%p163) target = $region12
      $region11: #{tpu_custom_call.1} parent=5 // pred_region
        %s167 = ssub.s32 %s17, 1
        // Predicated region
        $region13: #{tpu_custom_call.1} parent=11 // pred_check
          %p168 = pneg %p64
        $region14: #{tpu_custom_call.1} parent=11 // pred_check_branch
          %170 = sbr.rel (%p168) target = $region16
        $region15: #{tpu_custom_call.1} parent=11 // pred_region
          _
        $region16: #{tpu_custom_call.1} parent=11 // pred_fallthru
          _
        // Predicated region
        $region17: #{tpu_custom_call.1} parent=11 // pred_check
          %p171 = pneg %p85
        $region18: #{tpu_custom_call.1} parent=11 // pred_check_branch
          %173 = sbr.rel (%p171) target = $region20
        $region19: #{tpu_custom_call.1} parent=11 // pred_region
          _
        $region20: #{tpu_custom_call.1} parent=11 // pred_fallthru
          _
        // Predicated region
        $region21: #{tpu_custom_call.1} parent=11 // pred_check
          %p174 = pneg %p106
        $region22: #{tpu_custom_call.1} parent=11 // pred_check_branch
          %176 = sbr.rel (%p174) target = $region24
        $region23: #{tpu_custom_call.1} parent=11 // pred_region
          _
        $region24: #{tpu_custom_call.1} parent=11 // pred_fallthru
          _
        // Predicated region
        $region25: #{tpu_custom_call.1} parent=11 // pred_check
          %p177 = pneg %p127
        $region26: #{tpu_custom_call.1} parent=11 // pred_check_branch
          %179 = sbr.rel (%p177) target = $region28
        $region27: #{tpu_custom_call.1} parent=11 // pred_region
          _
        $region28: #{tpu_custom_call.1} parent=11 // pred_fallthru
          _
      $region12: #{tpu_custom_call.1} parent=5 // pred_fallthru
        _
      %p180 = scmp.lt.s32.totalorder %s17, 2
      // Predicated region
      $region29: #{tpu_custom_call.1} parent=5 // pred_check
        %p181 = pneg %p180
      $region30: #{tpu_custom_call.1} parent=5 // pred_check_branch
        %183 = sbr.rel (%p181) target = $region32
      $region31: #{tpu_custom_call.1} parent=5 // pred_region
        // Predicated region
        $region33: #{tpu_custom_call.1} parent=31 // pred_check
          %p184 = pneg %p37
        $region34: #{tpu_custom_call.1} parent=31 // pred_check_branch
          %186 = sbr.rel (%p184) target = $region36
        $region35: #{tpu_custom_call.1} parent=31 // pred_region
          %s187 = sand.u32 %s27, 1
          %s188 = scalar_lea.sflag [#allocation3], %s187
          %s189 = sand.u32 %s27, 1
          %s190 = smul.addr %s189, 64
          %s191 = scalar_lea.vmem [#allocation2], %s190
          %s193 = ssub.s32 1024, 1024
          %194 = vsyncadd %s188, %s193
          %s195 = smul.addr %s17, 8
          %s196 = smul.addr %s195, 128
          %s197 = scalar_lea.hbm %s0, %s196
          %s198 = sshll.u32 %s191, 4
          %s199 = int_to_ptr.vmem [resolvable:$true] %s198
          %204 = dma.hbm_to_vmem [thread:$0]  %s197, 1024, %s199, %s188, 256, 256, 16
        $region36: #{tpu_custom_call.1} parent=31 // pred_fallthru
          _
      $region32: #{tpu_custom_call.1} parent=5 // pred_fallthru
        _
      %p205 = scmp.le.s32.totalorder 1, %s17
      %p206 = scmp.lt.s32.totalorder %s17, 3
      %p207 = pnand %p205, %p206
      %p208 = pneg %p207
      // Predicated region
      $region37: #{tpu_custom_call.1} parent=5 // pred_check
        _
      $region38: #{tpu_custom_call.1} parent=5 // pred_check_branch
        %210 = sbr.rel (%p207) target = $region40
      $region39: #{tpu_custom_call.1} parent=5 // pred_region
        %s211 = ssub.s32 %s17, 1
        %s212 = sand.u32 %s30, 1
        %s213 = scalar_lea.sflag [#allocation3], %s212
        %s214 = sand.u32 %s30, 1
        %s215 = smul.addr %s214, 64
        %s216 = scalar_lea.vmem [#allocation2], %s215
        // Predicated region
        $region41: #{tpu_custom_call.1} parent=39 // pred_check
          %p217 = pneg %p43
        $region42: #{tpu_custom_call.1} parent=39 // pred_check_branch
          %219 = sbr.rel (%p217) target = $region44
        $region43: #{tpu_custom_call.1} parent=39 // pred_region
          %220 = dma.done %s213, 1024
        $region44: #{tpu_custom_call.1} parent=39 // pred_fallthru
          _
        %s221 = sand.u32 %s30, 1
        %s222 = scalar_lea.sflag [#allocation3], %s221
        %s223 = sand.u32 %s30, 1
        %s224 = smul.addr %s223, 64
        %s225 = scalar_lea.vmem [#allocation2], %s224
        %p226 = pneg %p43
        %p227 = pneg %p40
        %p228 = pneg %p64
        %p229 = pneg %p61
        %p230 = pneg %p85
        %p231 = pneg %p82
        %p232 = pneg %p106
        %p233 = pneg %p103
        %p234 = pneg %p127
        %p235 = pneg %p124
        %p236 = pneg %p153
        %p237 = pneg %p150
        %s238 = sand.u32 %s140, 1
        %s239 = scalar_lea.sflag [#allocation4], %s238
        %s240 = sand.u32 %s140, 1
        %s241 = smul.addr %s240, 64
        %s242 = scalar_lea.vmem [#allocation5], %s241
        %v243 = vld [vmem:[%s216] sm:$0xff]
        %v244 = vld [vmem:[%s216 + $0x8] sm:$0xff]
        %v245 = vld [vmem:[%s216 + $0x10] sm:$0xff]
        %v246 = vld [vmem:[%s216 + $0x18] sm:$0xff]
        %v247 = vld [vmem:[%s216 + $0x20] sm:$0xff]
        %v248 = vld [vmem:[%s216 + $0x28] sm:$0xff]
        %v249 = vld [vmem:[%s216 + $0x30] sm:$0xff]
        %v250 = vld [vmem:[%s216 + $0x38] sm:$0xff]
        %v251 = vadd.f32 %v243, %v244
        %252 = vadd.xlane.f32.xlu0 %v251
        %v253 = vpop.xlane.xlu0 %252
        %v254 = vadd.f32 %v245, %v246
        %255 = vadd.xlane.f32.xlu0 %v254
        %v256 = vpop.xlane.xlu0 %255
        %v257 = vadd.f32 %v247, %v248
        %258 = vadd.xlane.f32.xlu0 %v257
        %v259 = vpop.xlane.xlu0 %258
        %v260 = vadd.f32 %v249, %v250
        %261 = vadd.xlane.f32.xlu0 %v260
        %v262 = vpop.xlane.xlu0 %261
        %v263 = vmul.f32 %v253, 0.00390625
        %v264 = vmul.f32 %v256, 0.00390625
        %v265 = vmul.f32 %v259, 0.00390625
        %v266 = vmul.f32 %v262, 0.00390625
        %v267 = vld [vmem:[%s1] sm:$0x3]
        %v268 = vld [vmem:[%s2] sm:$0x1]
        %v269 = vld [vmem:[%s3] sm:$0xff]
        %v270 = vld [vmem:[%s3 + $0x8] sm:$0xff]
        %v271 = vld [vmem:[%s3 + $0x10] sm:$0xff]
        %v272 = vld [vmem:[%s3 + $0x18] sm:$0xff]
        %v273 = vld [vmem:[%s4] sm:$0x1]
        %v278 = vlaneseq
        %v279 = vand.u32 %v278, 127
        %v280 = vlaneseq
        %v281 = vshrl.u32 %v280, 7
        %v282 = vsub.s32 %v279, %v281
        %v283 = vrot.slane %v263, %v282
        %v284 = vadd.s32 %v279, 4294967288
        %v285 = vlaneseq
        %v286 = vshrl.u32 %v285, 7
        %v287 = vsub.s32 %v284, %v286
        %v288 = vrot.slane %v264, %v287
        %vm289 = vcmask 130112
        %v290 = vsel %vm289, %v288, %v283
        %v291 = vadd.s32 %v279, 4294967280
        %v292 = vlaneseq
        %v293 = vshrl.u32 %v292, 7
        %v294 = vsub.s32 %v291, %v293
        %v295 = vrot.slane %v265, %v294
        %vm296 = vcmask 195712
        %v297 = vsel %vm296, %v295, %v290
        %v298 = vadd.s32 %v279, 4294967272
        %v299 = vlaneseq
        %v300 = vshrl.u32 %v299, 7
        %v301 = vsub.s32 %v298, %v300
        %v302 = vrot.slane %v266, %v301
        %vm303 = vcmask 261312
        %v304 = vsel %vm303, %v302, %v297
        %v306 = vmul.f32 %v267, %v304
        %vm307 = vcmask 254976
        %v308 = vsel %vm307, %v306, 0.0
        %309 = vadd.xlane.f32.xlu0 %v308
        %v310 = vpop.xlane.xlu0 %309
        %v312 = vlaneseq
        %v313 = vshrl.u32 %v312, 7
        %v314 = vsub.s32 0, %v313
        %v315 = vrot.slane %v268, %v314
        %317 = vbcast.lane.b32.xlu0 %v315, 256
        %v318 = vpop.permute.xlu0 %317
        %v320 = vadd.f32 %v310, %v318
        %v321 = vxor.u32 %v320, 2147483648
        %v322 = vmul.f32 %v321, 1.442695
        %v323 = vpow.pop %v322
        %v324 = vadd.f32 %v323, 1.0
        %v325 = vrcp.pop %v324
        %v326 = vmul.f32 1.0, %v325
        %v327 = vmul.f32 %v320, %v326
        %329 = vset.pattern.permute.xlu0 0
        %330 = vperm.xlu0 %329, %v327
        %v331 = vpop.permute.xlu0 %330
        %v332 = vlaneseq
        %v333 = vshrl.u32 %v332, 7
        %v334 = vsub.s32 %v279, %v333
        %v335 = vrot.slane %v331, %v334
        %vm336 = vcmask 1042434
        %v337 = vsel %vm336, %v335, %v335
        %vm338 = vcmask 1043459
        %v339 = vsel %vm338, %v335, %v337
        %vm340 = vcmask 1044484
        %v341 = vsel %vm340, %v335, %v339
        %vm342 = vcmask 1045509
        %v343 = vsel %vm342, %v335, %v341
        %vm344 = vcmask 1046534
        %v345 = vsel %vm344, %v335, %v343
        %vm346 = vcmask 1047559
        %v347 = vsel %vm346, %v335, %v345
        %v349 = vmul.f32 %v269, %v347
        %v350 = vmul.f32 %v270, %v347
        %v351 = vmul.f32 %v271, %v347
        %v352 = vmul.f32 %v272, %v347
        %vm353 = vcmask 15360
        %v354 = vsel %vm353, %v349, 0.0
        %355 = vadd.xlane.f32.xlu0 %v354
        %v356 = vpop.xlane.xlu0 %355
        %v357 = vsel %vm353, %v350, 0.0
        %358 = vadd.xlane.f32.xlu0 %v357
        %v359 = vpop.xlane.xlu0 %358
        %v360 = vsel %vm353, %v351, 0.0
        %361 = vadd.xlane.f32.xlu0 %v360
        %v362 = vpop.xlane.xlu0 %361
        %v363 = vsel %vm353, %v352, 0.0
        %364 = vadd.xlane.f32.xlu0 %v363
        %v365 = vpop.xlane.xlu0 %364
        %v367 = vlaneseq
        %v368 = vshrl.u32 %v367, 7
        %v369 = vsub.s32 0, %v368
        %v370 = vrot.slane %v273, %v369
        %372 = vbcast.lane.b32.xlu0 %v370, 256
        %v373 = vpop.permute.xlu0 %372
        %s375 = sor.u32 256, 8
        %376 = vbcast.lane.b32.xlu0 %v370, %s375
        %v377 = vpop.permute.xlu0 %376
        %s379 = sor.u32 256, 16
        %380 = vbcast.lane.b32.xlu0 %v370, %s379
        %v381 = vpop.permute.xlu0 %380
        %s383 = sor.u32 256, 24
        %384 = vbcast.lane.b32.xlu0 %v370, %s383
        %v385 = vpop.permute.xlu0 %384
        %v390 = vadd.f32 %v356, %v373
        %v391 = vadd.f32 %v359, %v377
        %v392 = vadd.f32 %v362, %v381
        %v393 = vadd.f32 %v365, %v385
        %v394 = vxor.u32 %v390, 2147483648
        %v395 = vxor.u32 %v391, 2147483648
        %v396 = vxor.u32 %v392, 2147483648
        %v397 = vxor.u32 %v393, 2147483648
        %v398 = vmul.f32 %v394, 1.442695
        %v399 = vpow.pop %v398
        %v400 = vmul.f32 %v395, 1.442695
        %v401 = vpow.pop %v400
        %v402 = vmul.f32 %v396, 1.442695
        %v403 = vpow.pop %v402
        %v404 = vmul.f32 %v397, 1.442695
        %v405 = vpow.pop %v404
        %v406 = vadd.f32 %v399, 1.0
        %v407 = vadd.f32 %v401, 1.0
        %v408 = vadd.f32 %v403, 1.0
        %v409 = vadd.f32 %v405, 1.0
        %v410 = vrcp.pop %v406
        %v411 = vmul.f32 1.0, %v410
        %v412 = vrcp.pop %v407
        %v413 = vmul.f32 1.0, %v412
        %v414 = vrcp.pop %v408
        %v415 = vmul.f32 1.0, %v414
        %v416 = vrcp.pop %v409
        %v417 = vmul.f32 1.0, %v416
        %419 = vset.pattern.permute.xlu0 0
        %420 = vperm.xlu0 %419, %v411
        %v421 = vpop.permute.xlu0 %420
        %424 = vset.pattern.permute.xlu0 0
        %425 = vperm.xlu0 %424, %v413
        %v426 = vpop.permute.xlu0 %425
        %429 = vset.pattern.permute.xlu0 0
        %430 = vperm.xlu0 %429, %v415
        %v431 = vpop.permute.xlu0 %430
        %434 = vset.pattern.permute.xlu0 0
        %435 = vperm.xlu0 %434, %v417
        %v436 = vpop.permute.xlu0 %435
        %v438 = vmul.f32 %v243, %v421
        %v439 = vmul.f32 %v244, %v421
        %v440 = vmul.f32 %v245, %v426
        %v441 = vmul.f32 %v246, %v426
        %v442 = vmul.f32 %v247, %v431
        %v443 = vmul.f32 %v248, %v431
        %v444 = vmul.f32 %v249, %v436
        %v445 = vmul.f32 %v250, %v436
        %446 = vst [vmem:[%s242] sm:$0xff] %v438
        %447 = vst [vmem:[%s242 + $0x8] sm:$0xff] %v439
        %448 = vst [vmem:[%s242 + $0x10] sm:$0xff] %v440
        %449 = vst [vmem:[%s242 + $0x18] sm:$0xff] %v441
        %450 = vst [vmem:[%s242 + $0x20] sm:$0xff] %v442
        %451 = vst [vmem:[%s242 + $0x28] sm:$0xff] %v443
        %452 = vst [vmem:[%s242 + $0x30] sm:$0xff] %v444
        %453 = vst [vmem:[%s242 + $0x38] sm:$0xff] %v445
        %s454 = sand.u32 %s140, 1
        %s455 = scalar_lea.sflag [#allocation4], %s454
        %s456 = sand.u32 %s140, 1
        %s457 = smul.addr %s456, 64
        %s458 = scalar_lea.vmem [#allocation5], %s457
        // Predicated region
        $region45: #{tpu_custom_call.1} parent=39 // pred_check
          %p459 = pneg %p150
        $region46: #{tpu_custom_call.1} parent=39 // pred_check_branch
          %461 = sbr.rel (%p459) target = $region48
        $region47: #{tpu_custom_call.1} parent=39 // pred_region
          %s463 = ssub.s32 1024, 1024
          %464 = vsyncadd %s455, %s463
          %s465 = smul.addr %s22, 8
          %s466 = smul.addr %s465, 128
          %s467 = scalar_lea.hbm %s5, %s466
          %s468 = sshll.u32 %s458, 4
          %s469 = int_to_ptr.vmem [resolvable:$true] %s468
          %474 = dma.vmem_to_hbm [thread:$0]  %s469, 1024, %s467, %s455, 256, 256, 16
        $region48: #{tpu_custom_call.1} parent=39 // pred_fallthru
          _
      $region40: #{tpu_custom_call.1} parent=5 // pred_fallthru
        _
      %p475 = scmp.le.s32.totalorder 2, %s17
      // Predicated region
      $region49: #{tpu_custom_call.1} parent=5 // pred_check
        %p476 = pneg %p475
      $region50: #{tpu_custom_call.1} parent=5 // pred_check_branch
        %478 = sbr.rel (%p476) target = $region52
      $region51: #{tpu_custom_call.1} parent=5 // pred_region
        %s479 = ssub.s32 %s17, 2
        // Predicated region
        $region53: #{tpu_custom_call.1} parent=51 // pred_check
          %p480 = pneg %p156
        $region54: #{tpu_custom_call.1} parent=51 // pred_check_branch
          %482 = sbr.rel (%p480) target = $region56
        $region55: #{tpu_custom_call.1} parent=51 // pred_region
          %s483 = sand.u32 %s141, 1
          %s484 = scalar_lea.sflag [#allocation4], %s483
          %s485 = sand.u32 %s141, 1
          %s486 = smul.addr %s485, 64
          %s487 = scalar_lea.vmem [#allocation5], %s486
          %488 = dma.done %s484, 1024
        $region56: #{tpu_custom_call.1} parent=51 // pred_fallthru
          _
      $region52: #{tpu_custom_call.1} parent=5 // pred_fallthru
        _
    $region6: #{tpu_custom_call.1} parent=1 // loop_footer
      %s21 = sadd.s32 1, %s17
    $region7: #{tpu_custom_call.1} parent=1 // loop_footer_branch
      %16 = sbr.rel target = $region3
    $region8: #{tpu_custom_call.1} parent=1 // loop_exit
      _
    %489 = vsyncpa [#allocation3], 1
    %s490 = scalar_lea.sflag [#allocation3], 1
    %491 = vsyncpa %s490, 1
    %492 = vsyncpa [#allocation4], 1
    %s493 = scalar_lea.sflag [#allocation4], 1
    %494 = vsyncpa %s493, 1

</llo_original>
